<compile_context>
chip_gen: v5e
topology: v5e:2x2
jax: 0.10.0
libtpu: 0.0.40
codegen_flags: <defaults>
</compile_context>

<pallas_src>
import math
from functools import partial

import jax
import jax.numpy as jnp
from jax import lax
from jax.experimental import pallas as pl
from jax.experimental.pallas import tpu as pltpu

LN_EPS = 1e-12               # HF BertConfig layer_norm_eps
BF16 = jnp.bfloat16

TM, TN, TK = 256, 256, 512   # MXU-friendly matmul tile targets (clipped to dims below)
TI = 512                     # FFN intermediate-dim (k) tile
TQ = 256                     # attention query tile


def _vmem_limit_bytes():
    """Generation-aware scoped-VMEM limit: ~75% of physical, capped at 100 MiB."""
    try:
        phys = pltpu.get_tpu_info().vmem_capacity_bytes
    except Exception:
        phys = 64 * 1024 * 1024          # conservative fallback (v7x per-core VMEM)
    return min(int(phys * 3 // 4), 100 * 1024 * 1024)


VMEM_LIMIT = _vmem_limit_bytes()


def _cparams(dim_sem):
    return pltpu.CompilerParams(dimension_semantics=dim_sem,
                                vmem_limit_bytes=VMEM_LIMIT)


def _tile(dim, target, align):
    """Largest tile <= target that divides dim AND is a multiple of `align`.
    Returns the full dim when dim <= target (full-extent blocks are always legal)."""
    if dim <= target:
        return dim
    for t in range(target, 0, -1):
        if dim % t == 0 and t % align == 0:
            return t
    # TODO(synk): pad + mask instead of a full-extent fallback for pathological dims.
    return dim


def _gelu_exact(x):
    # exact (erf) GELU, matching HF "gelu"
    return 0.5 * x * (1.0 + lax.erf(x * (1.0 / math.sqrt(2.0))))


def _layernorm(y, gamma, beta):
    mean = jnp.mean(y, axis=-1, keepdims=True)
    var = jnp.mean(jnp.square(y - mean), axis=-1, keepdims=True)
    return (y - mean) * lax.rsqrt(var + LN_EPS) * gamma + beta


# ----------------------------------------------------------------------------- kernels

def _matmul_bias_kernel(x_ref, w_ref, b_ref, o_ref, acc_ref):
    k = pl.program_id(2)

    @pl.when(k == 0)
    def _():
        acc_ref[...] = jnp.zeros_like(acc_ref)

    # weights arrive pre-cast to bf16; only the activation tile is cast in-kernel
    acc_ref[...] += jnp.dot(x_ref[...].astype(BF16), w_ref[...],
                            preferred_element_type=jnp.float32)

    @pl.when(k == pl.num_programs(2) - 1)
    def _():
        o_ref[...] = (acc_ref[...] + b_ref[...]).astype(o_ref.dtype)


def matmul_bias(x, w, b, out_dtype=None):
    """y = x @ w + b.  x: (N, K) f32/bf16, w: (K, O) bf16, b: (1, O) f32."""
    N, K = x.shape
    O = w.shape[1]
    out_dtype = out_dtype or x.dtype
    tm, tn, tk = _tile(N, TM, 8), _tile(O, TN, 128), _tile(K, TK, 128)
    ce = pl.CostEstimate(
        flops=2 * N * O * K, transcendentals=0,
        bytes_accessed=int(x.size * x.dtype.itemsize + w.size * w.dtype.itemsize
                           + b.size * 4 + N * O * jnp.dtype(out_dtype).itemsize))
    return pl.pallas_call(
        _matmul_bias_kernel,
        out_shape=jax.ShapeDtypeStruct((N, O), out_dtype),
        grid=(N // tm, O // tn, K // tk),
        in_specs=[
            pl.BlockSpec((tm, tk), lambda i, j, k: (i, k)),
            pl.BlockSpec((tk, tn), lambda i, j, k: (k, j)),
            pl.BlockSpec((1, tn), lambda i, j, k: (0, j)),
        ],
        out_specs=pl.BlockSpec((tm, tn), lambda i, j, k: (i, j)),
        scratch_shapes=[pltpu.VMEM((tm, tn), jnp.float32)],
        compiler_params=_cparams(("parallel", "parallel", "arbitrary")),
        cost_estimate=ce,
    )(x, w, b)


def _matmul_ln_kernel(x_ref, w_ref, b_ref, r_ref, g_ref, be_ref, o_ref, acc_ref):
    k = pl.program_id(1)

    @pl.when(k == 0)
    def _():
        acc_ref[...] = jnp.zeros_like(acc_ref)

    acc_ref[...] += jnp.dot(x_ref[...].astype(BF16), w_ref[...],
                            preferred_element_type=jnp.float32)

    @pl.when(k == pl.num_programs(1) - 1)
    def _():
        y = acc_ref[...] + b_ref[...] + r_ref[...]          # bias + residual epilogue
        o_ref[...] = _layernorm(y, g_ref[...], be_ref[...]).astype(o_ref.dtype)


def matmul_bias_ln_residual(x, w, b, residual, gamma, beta):
    """LayerNorm(x @ w + b + residual) -> f32.  Output columns kept whole (LN stats local)."""
    N, K = x.shape
    O = w.shape[1]
    tm, tk = _tile(N, TM, 8), _tile(K, TK, 128)
    ce = pl.CostEstimate(
        flops=2 * N * O * K, transcendentals=0,
        bytes_accessed=int(x.size * x.dtype.itemsize + w.size * w.dtype.itemsize
                           + 4 * (2 * N * O + 3 * O)))
    return pl.pallas_call(
        _matmul_ln_kernel,
        out_shape=jax.ShapeDtypeStruct((N, O), jnp.float32),
        grid=(N // tm, K // tk),
        in_specs=[
            pl.BlockSpec((tm, tk), lambda i, k: (i, k)),
            pl.BlockSpec((tk, O), lambda i, k: (k, 0)),
            pl.BlockSpec((1, O), lambda i, k: (0, 0), pipeline_mode=pl.Buffered(1)),
            pl.BlockSpec((tm, O), lambda i, k: (i, 0)),
            pl.BlockSpec((1, O), lambda i, k: (0, 0), pipeline_mode=pl.Buffered(1)),
            pl.BlockSpec((1, O), lambda i, k: (0, 0), pipeline_mode=pl.Buffered(1)),
        ],
        out_specs=pl.BlockSpec((tm, O), lambda i, k: (i, 0)),
        scratch_shapes=[pltpu.VMEM((tm, O), jnp.float32)],
        compiler_params=_cparams(("parallel", "arbitrary")),
        cost_estimate=ce,
    )(x, w, b, residual, gamma, beta)


def _ffn_ln_kernel(x_ref, w1_ref, b1_ref, w2_ref, b2_ref, g_ref, be_ref, o_ref, acc_ref):
    t = pl.program_id(1)

    @pl.when(t == 0)
    def _():
        acc_ref[...] = jnp.zeros_like(acc_ref)

    h = jnp.dot(x_ref[...].astype(BF16), w1_ref[...],
                preferred_element_type=jnp.float32) + b1_ref[...]
    h = _gelu_exact(h)                                     # (tm, ti) never leaves VMEM
    acc_ref[...] += jnp.dot(h.astype(BF16), w2_ref[...],
                            preferred_element_type=jnp.float32)

    @pl.when(t == pl.num_programs(1) - 1)
    def _():
        # residual re-uses x_ref itself (pre-FFN hidden state) -> no duplicate HBM read
        y = acc_ref[...] + b2_ref[...] + x_ref[...].astype(jnp.float32)
        o_ref[...] = _layernorm(y, g_ref[...], be_ref[...]).astype(o_ref.dtype)


def ffn_ln_residual(x, w1, b1, w2, b2, gamma, beta):
    """LayerNorm(GELU(x@w1+b1)@w2 + b2 + x), intermediate dim streamed in ti-sized tiles."""
    N, H = x.shape
    I = w1.shape[1]
    tm, ti = _tile(N, TM, 8), _tile(I, TI, 128)
    ce = pl.CostEstimate(
        flops=4 * N * H * I, transcendentals=N * I,
        bytes_accessed=int(4 * (2 * N * H + I + 3 * H)
                           + (w1.size + w2.size) * w1.dtype.itemsize))
    return pl.pallas_call(
        _ffn_ln_kernel,
        out_shape=jax.ShapeDtypeStruct((N, H), jnp.float32),
        grid=(N // tm, I // ti),
        in_specs=[
            pl.BlockSpec((tm, H), lambda i, t: (i, 0)),
            pl.BlockSpec((H, ti), lambda i, t: (0, t)),
            pl.BlockSpec((1, ti), lambda i, t: (0, t)),
            pl.BlockSpec((ti, H), lambda i, t: (t, 0)),
            pl.BlockSpec((1, H), lambda i, t: (0, 0), pipeline_mode=pl.Buffered(1)),
            pl.BlockSpec((1, H), lambda i, t: (0, 0), pipeline_mode=pl.Buffered(1)),
            pl.BlockSpec((1, H), lambda i, t: (0, 0), pipeline_mode=pl.Buffered(1)),
        ],
        out_specs=pl.BlockSpec((tm, H), lambda i, t: (i, 0)),
        scratch_shapes=[pltpu.VMEM((tm, H), jnp.float32)],
        compiler_params=_cparams(("parallel", "arbitrary")),
        cost_estimate=ce,
    )(x, w1, b1, w2, b2, gamma, beta)


def _ln_kernel(x_ref, g_ref, b_ref, o_ref):
    o_ref[...] = _layernorm(x_ref[...], g_ref[...], b_ref[...]).astype(o_ref.dtype)


def layer_norm(x, gamma, beta):
    """LayerNorm over last dim (no residual).  x: (N, H); gamma, beta: (1, H)."""
    N, H = x.shape
    tm = _tile(N, TM, 8)
    return pl.pallas_call(
        _ln_kernel,
        out_shape=jax.ShapeDtypeStruct((N, H), jnp.float32),
        grid=(N // tm,),
        in_specs=[
            pl.BlockSpec((tm, H), lambda i: (i, 0)),
            pl.BlockSpec((1, H), lambda i: (0, 0), pipeline_mode=pl.Buffered(1)),
            pl.BlockSpec((1, H), lambda i: (0, 0), pipeline_mode=pl.Buffered(1)),
        ],
        out_specs=pl.BlockSpec((tm, H), lambda i: (i, 0)),
        compiler_params=_cparams(("parallel",)),
    )(x, gamma, beta)


def _attention_kernel(qkv_ref, bias_ref, o_ref, ctx_ref, *, n_heads, head_dim, tq, scale):
    H = n_heads * head_dim
    q0 = pl.multiple_of(pl.program_id(1) * tq, 8)
    slab = qkv_ref.at[0]                    # (S, 3H) ref view — no whole-slab value load
    bias = bias_ref[0]                      # (1, S) additive mask, broadcasts over queries
    for h in range(n_heads):                # static unroll; all feature slices are static
        lo = h * head_dim
        q = slab[pl.ds(q0, tq), lo:lo + head_dim]               # (tq, d) bf16
        k = slab[:, H + lo:H + lo + head_dim]                    # (S, d)  bf16
        v = slab[:, 2 * H + lo:2 * H + lo + head_dim]            # (S, d)  bf16
        # contract head_dim on both operands -> no materialized K^T / XLU relayout
        s = lax.dot_general(q, k, (((1,), (1,)), ((), ())),
                            preferred_element_type=jnp.float32) * scale + bias  # (tq, S)
        m = jnp.max(s, axis=-1, keepdims=True)
        p = jnp.exp(s - m)
        # TODO(synk): approx reciprocal (~1e-3 rel err) — switch to exact divide for
        # strict bit-parity tests against HF.
        p = p * pl.reciprocal(jnp.sum(p, axis=-1, keepdims=True), approx=True)
        ctx_ref[:, lo:lo + head_dim] = jnp.dot(p.astype(BF16), v,
                                               preferred_element_type=jnp.float32)
    o_ref[0] = ctx_ref[...].astype(o_ref.dtype)   # single lane-dense store


def attention(qkv, bias, *, n_heads, head_dim):
    """qkv: (B, S, 3H) bf16 fused projection slab; bias: (B, 1, S) -> ctx (B, S, H) bf16."""
    B, S, H3 = qkv.shape
    H = n_heads * head_dim
    tq = _tile(S, TQ, 8)
    scale = 1.0 / math.sqrt(head_dim)
    # TODO(synk): for S >= ~2K, tile the KV axis with online softmax (flash-style)
    # instead of materializing the (tq, S) scores per head.
    return pl.pallas_call(
        partial(_attention_kernel, n_heads=n_heads, head_dim=head_dim, tq=tq, scale=scale),
        out_shape=jax.ShapeDtypeStruct((B, S, H), BF16),
        grid=(B, S // tq),
        in_specs=[
            # full-sequence K/V slab: index constant over qi -> fetched once per batch row
            pl.BlockSpec((1, S, H3), lambda b, qi: (b, 0, 0)),
            pl.BlockSpec((1, 1, S), lambda b, qi: (b, 0, 0)),
        ],
        out_specs=pl.BlockSpec((1, tq, H), lambda b, qi: (b, qi, 0)),
        scratch_shapes=[pltpu.VMEM((tq, H), jnp.float32)],
        compiler_params=_cparams(("parallel", "parallel")),
    )(qkv, bias)


# ----------------------------------------------------------------------------- model

def init_params(key, *, vocab=30, hidden=32, layers=2, heads=2, intermediate=64,
                max_pos=16, type_vocab=2):
    def nrm(k, shape):
        return (0.02 * jax.random.normal(k, shape)).astype(jnp.float32)

    keys = jax.random.split(key, 4 + layers)
    params = {
        "config": dict(vocab=vocab, hidden=hidden, layers=layers, heads=heads,
                       intermediate=intermediate, max_pos=max_pos, type_vocab=type_vocab),
        "word_emb": nrm(keys[0], (vocab, hidden)),
        "pos_emb": nrm(keys[1], (max_pos, hidden)),
        "type_emb": nrm(keys[2], (type_vocab, hidden)),
        "emb_ln_g": jnp.ones((1, hidden), jnp.float32),
        "emb_ln_b": jnp.zeros((1, hidden), jnp.float32),
        "layers": [],
    }
    for li in range(layers):
        lk = jax.random.split(keys[4 + li], 6)
        wq = nrm(lk[0], (hidden, hidden))
        wk = nrm(lk[1], (hidden, hidden))
        wv = nrm(lk[2], (hidden, hidden))
        layer = {
            # frozen matmul weights pre-cast to bf16 ONCE (halves DMA / VMEM bytes)
            "wqkv": jnp.concatenate([wq, wk, wv], axis=1).astype(BF16),   # (H, 3H)
            "bqkv": jnp.zeros((1, 3 * hidden), jnp.float32),
            "wo": nrm(lk[3], (hidden, hidden)).astype(BF16),
            "bo": jnp.zeros((1, hidden), jnp.float32),
            "ln1_g": jnp.ones((1, hidden), jnp.float32),
            "ln1_b": jnp.zeros((1, hidden), jnp.float32),
            "w1": nrm(lk[4], (hidden, intermediate)).astype(BF16),
            "b1": jnp.zeros((1, intermediate), jnp.float32),
            "w2": nrm(lk[5], (intermediate, hidden)).astype(BF16),
            "b2": jnp.zeros((1, hidden), jnp.float32),
            "ln2_g": jnp.ones((1, hidden), jnp.float32),
            "ln2_b": jnp.zeros((1, hidden), jnp.float32),
        }
        params["layers"].append(layer)
    return params


def bert_embedding_forward(params, input_ids, token_type_ids, attention_mask):
    cfg = params["config"]
    B, S = input_ids.shape
    H, nH = cfg["hidden"], cfg["heads"]
    d = H // nH
    N = B * S

    # --- embeddings (data-dependent gathers stay in plain JAX glue; LN in Pallas) ---
    we = jnp.take(params["word_emb"], input_ids, axis=0)                 # (B, S, H)
    pe = params["pos_emb"][:S][None, :, :]                               # (1, S, H)
    te = jnp.take(params["type_emb"], token_type_ids, axis=0)            # (B, S, H)
    emb = (we + pe + te).reshape(N, H)
    x = layer_norm(emb, params["emb_ln_g"], params["emb_ln_b"])          # (N, H) f32
    # TODO(synk): dropout omitted (frozen / inference-mode module).

    # extended attention mask bias: (1 - mask) * -10000, shape (B, 1, S)
    bias = ((1.0 - attention_mask.astype(jnp.float32)) * -10000.0)[:, None, :]

    for layer in params["layers"]:
        # fused QKV projection -> bf16 activation slab (largest inter-kernel tensor)
        qkv = matmul_bias(x, layer["wqkv"], layer["bqkv"], out_dtype=BF16)   # (N, 3H) bf16
        ctx = attention(qkv.reshape(B, S, 3 * H), bias,
                        n_heads=nH, head_dim=d)                              # (B, S, H) bf16
        # output projection + bias + residual + LayerNorm fused in one kernel
        x = matmul_bias_ln_residual(ctx.reshape(N, H), layer["wo"], layer["bo"],
                                    x, layer["ln1_g"], layer["ln1_b"])       # (N, H) f32
        # fused FFN: k-tiled intermediate, GELU in VMEM, residual = x_ref, + LN epilogue
        x = ffn_ln_residual(x, layer["w1"], layer["b1"], layer["w2"], layer["b2"],
                            layer["ln2_g"], layer["ln2_b"])                  # (N, H) f32

    return x.reshape(B, S, H)  # last_hidden_state


# ----------------------------------------------------------------------------- main

if __name__ == "__main__":
    key = jax.random.PRNGKey(0)
    pkey, ikey = jax.random.split(key)

    B, S = 2, 8
    params = init_params(pkey)
    cfg = params["config"]

    input_ids = jax.random.randint(ikey, (B, S), 0, cfg["vocab"], dtype=jnp.int32)
    token_type_ids = jnp.zeros((B, S), dtype=jnp.int32)
    # second sequence has two padding positions to exercise the attention mask
    attention_mask = jnp.array([[1] * S, [1] * (S - 2) + [0, 0]], dtype=jnp.int32)

    word_ids = {
        "input_ids": input_ids,
        "token_type_ids": token_type_ids,
        "attention_mask": attention_mask,
    }

    out = bert_embedding_forward(params, word_ids["input_ids"],
                                 word_ids["token_type_ids"],
                                 word_ids["attention_mask"])
    out = jax.block_until_ready(out)
    assert out.shape == (B, S, cfg["hidden"]), out.shape
    assert bool(jnp.all(jnp.isfinite(out)))
    print("KERNEL_OK")
</pallas_src>

<mosaic_0001>
module attributes {stable_mosaic.version = 11 : i64} {
  func.func @_ln_kernel(%arg0: i32, %arg1: memref<16x32xf32, #tpu.memory_space<vmem>>, %arg2: memref<1x32xf32, #tpu.memory_space<vmem>>, %arg3: memref<1x32xf32, #tpu.memory_space<vmem>>, %arg4: memref<16x32xf32, #tpu.memory_space<vmem>>) attributes {dimension_semantics = [#tpu.dimension_semantics<parallel>], iteration_bounds = array<i64: 1>, scalar_prefetch = 0 : i64, scratch_operands = 0 : i64, tpu.core_type = #tpu.core_type<tc>, window_params = [{transform_indices = @transform_0, window_bounds = array<i64: 16, 32>}, {pipeline_mode = #tpu.pipeline_mode<synchronous>, transform_indices = @transform_1, window_bounds = array<i64: 1, 32>}, {pipeline_mode = #tpu.pipeline_mode<synchronous>, transform_indices = @transform_2, window_bounds = array<i64: 1, 32>}, {transform_indices = @transform_3, window_bounds = array<i64: 16, 32>}]} {
    %c0 = arith.constant 0 : index
    %c0_0 = arith.constant 0 : index
    %0 = vector.load %arg1[%c0, %c0_0] : memref<16x32xf32, #tpu.memory_space<vmem>>, vector<16x32xf32>
    %c0_1 = arith.constant 0 : index
    %c0_2 = arith.constant 0 : index
    %1 = vector.load %arg2[%c0_1, %c0_2] : memref<1x32xf32, #tpu.memory_space<vmem>>, vector<1x32xf32>
    %c0_3 = arith.constant 0 : index
    %c0_4 = arith.constant 0 : index
    %2 = vector.load %arg3[%c0_3, %c0_4] : memref<1x32xf32, #tpu.memory_space<vmem>>, vector<1x32xf32>
    %cst = arith.constant dense<0.000000e+00> : vector<16xf32>
    %3 = vector.multi_reduction <add>, %0, %cst [1] : vector<16x32xf32> to vector<16xf32>
    %4 = vector.shape_cast %3 : vector<16xf32> to vector<16x1xf32>
    %cst_5 = arith.constant 3.200000e+01 : f32
    %5 = vector.broadcast %cst_5 : f32 to vector<16x1xf32>
    %6 = arith.divf %4, %5 : vector<16x1xf32>
    %7 = vector.broadcast %6 : vector<16x1xf32> to vector<16x32xf32>
    %8 = arith.subf %0, %7 : vector<16x32xf32>
    %9 = arith.mulf %8, %8 : vector<16x32xf32>
    %cst_6 = arith.constant dense<0.000000e+00> : vector<16xf32>
    %10 = vector.multi_reduction <add>, %9, %cst_6 [1] : vector<16x32xf32> to vector<16xf32>
    %11 = vector.shape_cast %10 : vector<16xf32> to vector<16x1xf32>
    %cst_7 = arith.constant 3.200000e+01 : f32
    %12 = vector.broadcast %cst_7 : f32 to vector<16x1xf32>
    %13 = arith.divf %11, %12 : vector<16x1xf32>
    %14 = vector.broadcast %6 : vector<16x1xf32> to vector<16x32xf32>
    %15 = arith.subf %0, %14 : vector<16x32xf32>
    %cst_8 = arith.constant 9.99999996E-13 : f32
    %16 = vector.broadcast %cst_8 : f32 to vector<16x1xf32>
    %17 = arith.addf %13, %16 : vector<16x1xf32>
    %18 = math.rsqrt %17 : vector<16x1xf32>
    %19 = vector.broadcast %18 : vector<16x1xf32> to vector<16x32xf32>
    %20 = arith.mulf %15, %19 : vector<16x32xf32>
    %21 = vector.broadcast %1 : vector<1x32xf32> to vector<16x32xf32>
    %22 = arith.mulf %20, %21 : vector<16x32xf32>
    %23 = vector.broadcast %2 : vector<1x32xf32> to vector<16x32xf32>
    %24 = arith.addf %22, %23 : vector<16x32xf32>
    %c0_9 = arith.constant 0 : index
    %c0_10 = arith.constant 0 : index
    %25 = vector.load %arg4[%c0_9, %c0_10] : memref<16x32xf32, #tpu.memory_space<vmem>>, vector<16x32xf32>
    tpu.vector_store %arg4[%c0_9, %c0_10], %24 {strides = array<i32>} : memref<16x32xf32, #tpu.memory_space<vmem>>, vector<16x32xf32>,
    return
  }
  func.func @transform_0(%arg0: i32) -> (i32, i32) {
    %c0_i32 = arith.constant 0 : i32
    %c0_i32_0 = arith.constant 0 : i32
    return %arg0, %c0_i32 : i32, i32
  }
  func.func @transform_1(%arg0: i32) -> (i32, i32) {
    %c0_i32 = arith.constant 0 : i32
    %c0_i32_0 = arith.constant 0 : i32
    %c0_i32_1 = arith.constant 0 : i32
    return %c0_i32, %c0_i32_0 : i32, i32
  }
  func.func @transform_2(%arg0: i32) -> (i32, i32) {
    %c0_i32 = arith.constant 0 : i32
    %c0_i32_0 = arith.constant 0 : i32
    %c0_i32_1 = arith.constant 0 : i32
    return %c0_i32, %c0_i32_0 : i32, i32
  }
  func.func @transform_3(%arg0: i32) -> (i32, i32) {
    %c0_i32 = arith.constant 0 : i32
    %c0_i32_0 = arith.constant 0 : i32
    return %arg0, %c0_i32 : i32, i32
  }
}

</mosaic_0001>

<llo_original>
// kernel: tpu_custom_call.1
$region0: #{tpu_custom_call.1}
  #allocation0 [shape = 'u32[]', space=smem, size = 0x4, offset = 0x4, fixed_abs, tag = 'smem constant byte address 0x4 - core index']
  #allocation1 [shape = 'u32[72,128]{1,0:T(1,128)}', space=vmem, size = 0x9000, scoped, tag = 'internal scratch']
  %s0 = inlined_call_operand.hbm [shape: f32[16,32], index: 0, kind: input, shape index: {}]
  %s1 = inlined_call_operand.hbm [shape: f32[1,32], index: 1, kind: input, shape index: {}]
  %s2 = inlined_call_operand.vmem [shape: f32[1,32], index: 2, kind: input, shape index: {}]
  %s3 = inlined_call_operand.hbm [shape: f32[16,32], index: 3, kind: output, shape index: {}]
  %s4 = sld [smem:[#allocation0]]
  $region30: #{tpu_custom_call.1} parent=0
    _
  %s6 = ssub.s32 1, %s4
  %s7 = scalar_select 0, %s6, %s4
  $region1: #{tpu_custom_call.1} parent=0
    #allocation2 [shape = 'u8[8192]{0}', space=vmem, size = 0x2000, scoped, tag = 'input window, operand 0, single buffered']
    #allocation3 [shape = 's32[1]{0}', space=sflag, size = 0x4, scoped, tag = 'scoped memory for tpu_custom_call.1']
    #allocation4 [shape = 's32[1]{0}', space=sflag, size = 0x4, scoped, tag = 'scoped memory for tpu_custom_call.1']
    #allocation5 [shape = 'u8[512]{0}', space=vmem, size = 0x400, scoped, tag = 'input window, operand 1, single buffered']
    #allocation6 [shape = 's32[1]{0}', space=sflag, size = 0x4, scoped, tag = 'scoped memory for tpu_custom_call.1']
    #allocation7 [shape = 'u8[8192]{0}', space=vmem, size = 0x2000, scoped, tag = 'output window, operand 0, single buffered']
    %8 = vsyncpa [#allocation3], 0
    %9 = vsyncpa [#allocation6], 0
    %10 = vsyncpa [#allocation4], 0
    // Predicated region
    $region2: #{tpu_custom_call.1} parent=1 // pred_check
      _
    $region3: #{tpu_custom_call.1} parent=1 // pred_check_branch
      %12 = sbr.rel (0) target = $region5
    $region4: #{tpu_custom_call.1} parent=1 // pred_region
      %14 = vsyncadd [#allocation3], 0
      %s15 = sshll.u32 %s0, 4
      %s16 = int_to_ptr.hbm [resolvable:$true] %s15
      %s17 = sshll.u32 [#allocation2], 4
      %s18 = int_to_ptr.vmem [resolvable:$true] %s17
      %23 = dma.hbm_to_vmem [thread:$0]  %s16, 256, %s18, [#allocation3], 128, 128, 8
    $region5: #{tpu_custom_call.1} parent=1 // pred_fallthru
      _
    // Predicated region
    $region6: #{tpu_custom_call.1} parent=1 // pred_check
      _
    $region7: #{tpu_custom_call.1} parent=1 // pred_check_branch
      %25 = sbr.rel (0) target = $region9
    $region8: #{tpu_custom_call.1} parent=1 // pred_region
      %27 = vsyncadd [#allocation6], 0
      %s29 = sshll.u32 %s1, 4
      %s30 = int_to_ptr.hbm [resolvable:$true] %s29
      %s31 = sshll.u32 [#allocation5], 4
      %s32 = int_to_ptr.vmem [resolvable:$true] %s31
      %34 = dma.hbm_to_vmem [thread:$0]  %s30, 16, %s32, [#allocation6]
    $region9: #{tpu_custom_call.1} parent=1 // pred_fallthru
      _
    // Predicated region
    $region10: #{tpu_custom_call.1} parent=1 // pred_check
      _
    $region11: #{tpu_custom_call.1} parent=1 // pred_check_branch
      %36 = sbr.rel (0) target = $region13
    $region12: #{tpu_custom_call.1} parent=1 // pred_region
      _
    $region13: #{tpu_custom_call.1} parent=1 // pred_fallthru
      _
    // Predicated region
    $region14: #{tpu_custom_call.1} parent=1 // pred_check
      _
    $region15: #{tpu_custom_call.1} parent=1 // pred_check_branch
      %38 = sbr.rel (0) target = $region17
    $region16: #{tpu_custom_call.1} parent=1 // pred_region
      %40 = dma.done [#allocation3], 256
    $region17: #{tpu_custom_call.1} parent=1 // pred_fallthru
      _
    // Predicated region
    $region18: #{tpu_custom_call.1} parent=1 // pred_check
      _
    $region19: #{tpu_custom_call.1} parent=1 // pred_check_branch
      %42 = sbr.rel (0) target = $region21
    $region20: #{tpu_custom_call.1} parent=1 // pred_region
      %44 = dma.done [#allocation6], 16
    $region21: #{tpu_custom_call.1} parent=1 // pred_fallthru
      _
    %v45 = vld [vmem:[#allocation2] sm:$0xff]
    %v46 = vld [vmem:[#allocation2 + $0x8] sm:$0xff]
    %v47 = vld [vmem:[#allocation5] sm:$0x1]
    %v48 = vld [vmem:[%s2] sm:$0x1]
    %vm49 = vcmask 261120
    %v50 = vsel %vm49, %v45, 0.0
    %51 = vadd.xlane.f32.xlu0 %v50
    %v52 = vpop.xlane.xlu0 %51
    %v53 = vsel %vm49, %v46, 0.0
    %54 = vadd.xlane.f32.xlu0 %v53
    %v55 = vpop.xlane.xlu0 %54
    %v56 = vrcp.pop 32.0
    %v57 = vmul.f32 32.0, %v56
    %v58 = vsub.f32 1.0, %v57
    %v59 = vmul.f32 %v56, %v58
    %v60 = vadd.f32 %v56, %v59
    %vm61 = vweird.f32 %v56
    %v62 = vsel %vm61, %v56, %v60
    %v63 = vmul.f32 %v52, %v62
    %v64 = vmul.f32 %v55, %v62
    %v65 = vsub.f32 %v45, %v63
    %v66 = vsub.f32 %v46, %v64
    %v67 = vmul.f32 %v65, %v65
    %v68 = vmul.f32 %v66, %v66
    %v69 = vsel %vm49, %v67, 0.0
    %70 = vadd.xlane.f32.xlu0 %v69
    %v71 = vpop.xlane.xlu0 %70
    %v72 = vsel %vm49, %v68, 0.0
    %73 = vadd.xlane.f32.xlu0 %v72
    %v74 = vpop.xlane.xlu0 %73
    %v75 = vmul.f32 %v71, %v62
    %v76 = vmul.f32 %v74, %v62
    %v77 = vadd.f32 %v75, 1e-12
    %v78 = vadd.f32 %v76, 1e-12
    %v79 = vrsqrt.pop %v77
    %v80 = vmul.f32 %v79, %v77
    %v81 = vmul.f32 %v80, %v79
    %v82 = vmul.f32 0.5, %v81
    %v83 = vsub.f32 1.5, %v82
    %v84 = vmul.f32 %v79, %v83
    %vm85 = vweird.f32 %v77
    %vm86 = vweird.f32 %v79
    %vm87 = vmor %vm85, %vm86
    %v88 = vsel %vm87, %v79, %v84
    %v89 = vrsqrt.pop %v78
    %v90 = vmul.f32 %v89, %v78
    %v91 = vmul.f32 %v90, %v89
    %v92 = vmul.f32 0.5, %v91
    %v93 = vsub.f32 1.5, %v92
    %v94 = vmul.f32 %v89, %v93
    %vm95 = vweird.f32 %v78
    %vm96 = vweird.f32 %v89
    %vm97 = vmor %vm95, %vm96
    %v98 = vsel %vm97, %v89, %v94
    %v99 = vmul.f32 %v65, %v88
    %v100 = vmul.f32 %v66, %v98
    %v102 = vperm.slane %v47, 0
    %v104 = vmul.f32 %v99, %v102
    %v105 = vmul.f32 %v100, %v102
    %v107 = vperm.slane %v48, 0
    %v109 = vadd.f32 %v104, %v107
    %v110 = vadd.f32 %v105, %v107
    %111 = vst.msk [vmem:[#allocation7] sm:$0xff] %vm49, %v109
    %112 = vst.msk [vmem:[#allocation7 + $0x8] sm:$0xff] %vm49, %v110
    // Predicated region
    $region22: #{tpu_custom_call.1} parent=1 // pred_check
      _
    $region23: #{tpu_custom_call.1} parent=1 // pred_check_branch
      %114 = sbr.rel (0) target = $region25
    $region24: #{tpu_custom_call.1} parent=1 // pred_region
      %116 = vsyncadd [#allocation4], 0
      %s117 = sshll.u32 [#allocation7], 4
      %s118 = int_to_ptr.vmem [resolvable:$true] %s117
      %s119 = sshll.u32 %s3, 4
      %s120 = int_to_ptr.hbm [resolvable:$true] %s119
      %125 = dma.vmem_to_hbm [thread:$0]  %s118, 256, %s120, [#allocation4], 128, 128, 8
    $region25: #{tpu_custom_call.1} parent=1 // pred_fallthru
      _
    // Predicated region
    $region26: #{tpu_custom_call.1} parent=1 // pred_check
      _
    $region27: #{tpu_custom_call.1} parent=1 // pred_check_branch
      %127 = sbr.rel (0) target = $region29
    $region28: #{tpu_custom_call.1} parent=1 // pred_region
      %129 = dma.done [#allocation4], 256
    $region29: #{tpu_custom_call.1} parent=1 // pred_fallthru
      _
    %130 = vsyncpa [#allocation3], 1
    %131 = vsyncpa [#allocation6], 1
    %132 = vsyncpa [#allocation4], 1

</llo_original>
